<compile_context>
chip_gen: v7x
topology: tpu7x:2x2x1
jax: 0.10.0
libtpu: 0.0.40
codegen_flags: <defaults>
</compile_context>

<pallas_src>
import jax
import jax.numpy as jnp
from jax.experimental import pallas as pl
from jax.experimental.pallas import tpu as pltpu


def _cdiv(a: int, b: int) -> int:
    return -(-a // b)


def _round_up(a: int, b: int) -> int:
    return _cdiv(a, b) * b


def _whiten_kernel(x_ref, w_ref, nb_ref, o_ref):
    """One (tm, tn) output block.

    The output block index is constant along the reduction (last) grid axis,
    so the block stays resident in VMEM: initialize it with the broadcast
    negative bias at kk == 0, then accumulate the partial matmul in place.
    """
    kk = pl.program_id(2)

    @pl.when(kk == 0)
    def _():
        # (x - mu) @ Wk  ==  x @ Wk + (-(mu @ Wk))
        o_ref[...] = jnp.broadcast_to(nb_ref[...], o_ref.shape)

    o_ref[...] += jnp.dot(
        x_ref[...], w_ref[...], preferred_element_type=jnp.float32
    )


def whitener_forward(
    x,
    mu,
    W,
    k,
    *,
    tm_max: int = 512,
    tk_max: int = 2048,
    tn_max: int = 512,
    allow_fast_path: bool = True,
    vmem_budget: int = 36 * 1024 * 1024,
):
    """Pallas implementation of Whitener.forward: (x - mu) @ W[:, :k]."""
    assert k is not None, (
        "You forgot to set k (dimensionality of the whitened embeddings)"
    )
    x = jnp.asarray(x, jnp.float32)
    mu = jnp.asarray(mu, jnp.float32)
    W = jnp.asarray(W, jnp.float32)

    N, D = x.shape
    k = min(int(k), D)

    Wk = W[:, :k]  # (D, k) static column slice of the parameter.

    # --- Small-problem fast path: a single fused XLA dot beats the kernel
    # launch + sub-128-lane output handling for the module's tiny shapes. ----
    if allow_fast_path and (N * D + D * k + N * k) <= (1 << 16):
        return jnp.matmul(x - mu, Wk, precision=jax.lax.Precision.HIGHEST)

    # Fold mu into a (1, k) negative bias (tiny; computed once in the wrapper).
    neg_bias = -jnp.matmul(mu[None, :], Wk, precision=jax.lax.Precision.HIGHEST)

    # --- Row tiling: 8-multiple tm, no row padding, >= 2 blocks when possible
    # so v7x's two TensorCores both get work on the "parallel" row axis. -----
    nb_rows = max(_cdiv(N, tm_max), 1)
    if nb_rows == 1 and N >= 16:
        nb_rows = 2
    tm = _round_up(_cdiv(N, nb_rows), 8)
    grid_m = _cdiv(N, tm)

    # --- Column tiling: prefer full-D / full-k blocks (no padding, x streamed
    # exactly once); fall back to 128-aligned tiles for very large D*k. ------
    full_fit = 2 * (tm * D + D * k + tm * k + k) * 4 <= vmem_budget
    if full_fit:
        tk, tn = D, k
        xp, Wp = x, Wk
        grid = (grid_m, 1, 1)
    else:
        tn = min(_round_up(k, 128), tn_max)
        # Largest 128-multiple tk that divides D (avoids padding x); else pad.
        tk = 0
        if D % 128 == 0:
            t = 128
            while t <= min(tk_max, D):
                if D % t == 0:
                    tk = t
                t += 128
        if tk == 0:
            tk = min(_round_up(D, 128), tk_max)
        Dp = _round_up(D, tk)
        if Dp != D:
            # Zero padding of the reduction dim preserves the matmul result.
            xp = jnp.pad(x, ((0, 0), (0, Dp - D)))
            Wp = jnp.pad(Wk, ((0, Dp - D), (0, 0)))
        else:
            xp, Wp = x, Wk
        grid = (grid_m, _cdiv(k, tn), Dp // tk)

    out = pl.pallas_call(
        _whiten_kernel,
        out_shape=jax.ShapeDtypeStruct((N, k), jnp.float32),
        grid_spec=pltpu.PrefetchScalarGridSpec(
            num_scalar_prefetch=0,
            grid=grid,
            in_specs=[
                pl.BlockSpec((tm, tk), lambda i, j, kk: (i, kk)),  # x tile
                pl.BlockSpec((tk, tn), lambda i, j, kk: (kk, j)),  # Wk tile
                pl.BlockSpec((1, tn), lambda i, j, kk: (0, j)),    # -mu @ Wk
            ],
            out_specs=pl.BlockSpec((tm, tn), lambda i, j, kk: (i, j)),
        ),
        compiler_params=pltpu.CompilerParams(
            dimension_semantics=("parallel", "parallel", "arbitrary"),
            # 48 MiB: leaves headroom on v7x's 64 MiB physical VMEM while
            # still far above the (<= 36 MiB) block footprint we allow.
            vmem_limit_bytes=48 * 1024 * 1024,
        ),
        cost_estimate=pl.CostEstimate(
            flops=2 * N * D * k,
            transcendentals=0,
            bytes_accessed=4 * (N * D * grid[1] + D * k + N * k),
        ),
    )(xp, Wp, neg_bias)

    return out

    # TODO(synk): compute_parameters (mean / covariance / SVD) is offline
    # parameter fitting, not part of forward; left to host-side JAX linalg.


if __name__ == "__main__":
    # SMALL shapes consistent with the module: embedding_dim=32, k=16, batch=16.
    embedding_dim = 32
    k = 16
    N = 16

    key = jax.random.PRNGKey(0)
    kx, kmu, kw = jax.random.split(key, 3)
    x = jax.random.normal(kx, (N, embedding_dim), dtype=jnp.float32)

    # Case 1: parameters exactly as in __init__ (mu = 0, W = I); force the
    # Pallas path (2 row blocks, full-D / full-k blocks).
    mu0 = jnp.zeros((embedding_dim,), dtype=jnp.float32)
    W0 = jnp.eye(embedding_dim, dtype=jnp.float32)
    out0 = jax.block_until_ready(
        whitener_forward(x, mu0, W0, k, allow_fast_path=False)
    )
    ref0 = jnp.matmul(x - mu0, W0[:, :k], precision=jax.lax.Precision.HIGHEST)
    assert out0.shape == (N, k)
    assert jnp.allclose(out0, ref0, atol=1e-5, rtol=1e-5), "mismatch (identity)"

    # Case 2: non-trivial mu / W through the Pallas kernel (bias fold path).
    mu1 = jax.random.normal(kmu, (embedding_dim,), dtype=jnp.float32)
    W1 = jax.random.normal(kw, (embedding_dim, embedding_dim), dtype=jnp.float32)
    out1 = jax.block_until_ready(
        whitener_forward(x, mu1, W1, k, allow_fast_path=False)
    )
    ref1 = jnp.matmul(x - mu1, W1[:, :k], precision=jax.lax.Precision.HIGHEST)
    assert out1.shape == (N, k)
    assert jnp.allclose(out1, ref1, atol=1e-4, rtol=1e-4), "mismatch (random)"

    # Case 3: the small-problem fast path gives the same answer.
    out_fast = jax.block_until_ready(whitener_forward(x, mu1, W1, k))
    assert jnp.allclose(out_fast, ref1, atol=1e-4, rtol=1e-4), "mismatch (fast)"

    # Case 4: exercise the tiled-reduction fallback (tiny budget forces K/N
    # tiling, zero-padded reduction, partial row / lane blocks).
    N2, D2, k2 = 300, 200, 72
    x2 = jax.random.normal(jax.random.PRNGKey(1), (N2, D2), dtype=jnp.float32)
    mu2 = jax.random.normal(jax.random.PRNGKey(2), (D2,), dtype=jnp.float32)
    W2 = jax.random.normal(
        jax.random.PRNGKey(3), (D2, D2), dtype=jnp.float32
    ) / jnp.sqrt(jnp.float32(D2))
    out2 = jax.block_until_ready(
        whitener_forward(
            x2, mu2, W2, k2, allow_fast_path=False, vmem_budget=64 * 1024
        )
    )
    ref2 = jnp.matmul(x2 - mu2, W2[:, :k2], precision=jax.lax.Precision.HIGHEST)
    assert out2.shape == (N2, k2)
    assert jnp.allclose(out2, ref2, atol=2e-3, rtol=2e-3), "mismatch (fallback)"

    print("KERNEL_OK")
</pallas_src>

<mosaic_0001>
module attributes {stable_mosaic.version = 11 : i64} {
  func.func @_whiten_kernel(%arg0: i32, %arg1: i32, %arg2: i32, %arg3: memref<8x32xf32, #tpu.memory_space<vmem>>, %arg4: memref<32x16xf32, #tpu.memory_space<vmem>>, %arg5: memref<1x16xf32, #tpu.memory_space<vmem>>, %arg6: memref<8x16xf32, #tpu.memory_space<vmem>>) attributes {dimension_semantics = [#tpu.dimension_semantics<parallel>, #tpu.dimension_semantics<parallel>, #tpu.dimension_semantics<arbitrary>], iteration_bounds = array<i64: 2, 1, 1>, scalar_prefetch = 0 : i64, scratch_operands = 0 : i64, tpu.core_type = #tpu.core_type<tc>, window_params = [{transform_indices = @transform_0, window_bounds = array<i64: 8, 32>}, {transform_indices = @transform_1, window_bounds = array<i64: 32, 16>}, {transform_indices = @transform_2, window_bounds = array<i64: 1, 16>}, {transform_indices = @transform_3, window_bounds = array<i64: 8, 16>}]} {
    %c0_i32 = arith.constant 0 : i32
    %0 = arith.cmpi eq, %arg2, %c0_i32 : i32
    %1 = arith.extui %0 : i1 to i32
    %c0_i32_0 = arith.constant 0 : i32
    %2 = arith.cmpi ne, %1, %c0_i32_0 : i32
    scf.if %2 {
      %c0_8 = arith.constant 0 : index
      %c0_9 = arith.constant 0 : index
      %9 = vector.load %arg5[%c0_8, %c0_9] : memref<1x16xf32, #tpu.memory_space<vmem>>, vector<1x16xf32>
      %10 = vector.shape_cast %9 : vector<1x16xf32> to vector<1x16xf32>
      %11 = vector.broadcast %10 : vector<1x16xf32> to vector<8x16xf32>
      %c0_10 = arith.constant 0 : index
      %c0_11 = arith.constant 0 : index
      %12 = vector.load %arg6[%c0_10, %c0_11] : memref<8x16xf32, #tpu.memory_space<vmem>>, vector<8x16xf32>
      tpu.vector_store %arg6[%c0_10, %c0_11], %11 {strides = array<i32>} : memref<8x16xf32, #tpu.memory_space<vmem>>, vector<8x16xf32>,
    } else {
    }
    %c0 = arith.constant 0 : index
    %c0_1 = arith.constant 0 : index
    %3 = vector.load %arg6[%c0, %c0_1] : memref<8x16xf32, #tpu.memory_space<vmem>>, vector<8x16xf32>
    %c0_2 = arith.constant 0 : index
    %c0_3 = arith.constant 0 : index
    %4 = vector.load %arg3[%c0_2, %c0_3] : memref<8x32xf32, #tpu.memory_space<vmem>>, vector<8x32xf32>
    %c0_4 = arith.constant 0 : index
    %c0_5 = arith.constant 0 : index
    %5 = vector.load %arg4[%c0_4, %c0_5] : memref<32x16xf32, #tpu.memory_space<vmem>>, vector<32x16xf32>
    %cst = arith.constant dense<0.000000e+00> : vector<8x16xf32>
    %6 = tpu.matmul %4, %5, %cst {dimension_numbers = #tpu.dot_dimension_numbers<[1], [0], [0], [1], [0, 0, 1, 1], [], []>} : vector<8x32xf32>, vector<32x16xf32>, vector<8x16xf32> -> vector<8x16xf32>
    %7 = arith.addf %3, %6 : vector<8x16xf32>
    %c0_6 = arith.constant 0 : index
    %c0_7 = arith.constant 0 : index
    %8 = vector.load %arg6[%c0_6, %c0_7] : memref<8x16xf32, #tpu.memory_space<vmem>>, vector<8x16xf32>
    tpu.vector_store %arg6[%c0_6, %c0_7], %7 {strides = array<i32>} : memref<8x16xf32, #tpu.memory_space<vmem>>, vector<8x16xf32>,
    return
  }
  func.func @transform_0(%arg0: i32, %arg1: i32, %arg2: i32) -> (i32, i32) {
    %c0_i32 = arith.constant 0 : i32
    return %arg0, %arg2 : i32, i32
  }
  func.func @transform_1(%arg0: i32, %arg1: i32, %arg2: i32) -> (i32, i32) {
    %c0_i32 = arith.constant 0 : i32
    return %arg2, %arg1 : i32, i32
  }
  func.func @transform_2(%arg0: i32, %arg1: i32, %arg2: i32) -> (i32, i32) {
    %c0_i32 = arith.constant 0 : i32
    %c0_i32_0 = arith.constant 0 : i32
    return %c0_i32, %arg1 : i32, i32
  }
  func.func @transform_3(%arg0: i32, %arg1: i32, %arg2: i32) -> (i32, i32) {
    %c0_i32 = arith.constant 0 : i32
    return %arg0, %arg1 : i32, i32
  }
}

</mosaic_0001>

<llo_original>
// kernel: tpu_custom_call.1
$region0: #{tpu_custom_call.1}
  #allocation0 [shape = 'u32[]', space=smem, size = 0x4, offset = 0x4, fixed_abs, tag = 'smem constant byte address 0x4 - core index']
  #allocation1 [shape = 'u32[144,128]{1,0:T(1,128)}', space=vmem, size = 0x12000, scoped, tag = 'internal scratch']
  %s0 = inlined_call_operand.vmem [shape: f32[16,32], index: 0, kind: input, shape index: {}]
  %s1 = inlined_call_operand.vmem [shape: f32[32,16], index: 1, kind: input, shape index: {}]
  %s2 = inlined_call_operand.vmem [shape: f32[1,16], index: 2, kind: input, shape index: {}]
  %s3 = inlined_call_operand.hbm [shape: f32[16,16], index: 3, kind: output, shape index: {}]
  %s4 = sld [smem:[#allocation0]]
  $region49: #{tpu_custom_call.1} parent=0
    _
  %s6 = ssub.s32 1, %s4
  %s7 = scalar_select 0, %s6, %s4
  $region1: #{tpu_custom_call.1} parent=0
    #allocation2 [shape = 'u8[8192]{0}', space=vmem, size = 0x2000, scoped, tag = 'output window, operand 0']
    #allocation3 [shape = 's32[2]{0}', space=sflag, size = 0x8, scoped, tag = 'scoped memory for tpu_custom_call.1']
    %8 = vsyncpa [#allocation3], 0
    %s9 = scalar_lea.sflag [#allocation3], 1
    %10 = vsyncpa %s9, 0
    loop: start=0, step=1, limit=4
    $region2: #{tpu_custom_call.1} parent=1 // loop_pre_header
      _
    $region3: #{tpu_custom_call.1} parent=1 // loop_header
      %s12 = sphi 0, %s16
      %p13 = scmp.ge.s32.totalorder %s12, 4
      %s19 = sphi 0, %s38
      %s20 = sphi 0, %s34
      %s21 = sphi 0, %s30
      %s22 = sphi 0, %s19
      %s23 = sphi 0, %s20
      %s24 = sphi 0, %s21
      %s25 = sphi 0, %s22
      %s26 = sphi 0, %s23
      %s27 = sphi 0, %s24
      %s43 = sphi 0, %s45
      %s46 = sphi 0, %s43
      %s47 = sphi 0, %s46
      %s63 = sphi 0, %s47
      %s71 = sphi 0, %s73
      %s74 = sphi 0, %s71
      %s75 = sphi 0, %s74
      %s91 = sphi 0, %s75
      %s97 = sphi 0, %s99
      %s100 = sphi 0, %s97
      %s101 = sphi 0, %s100
      %s117 = sphi 0, %s101
      %s125 = sphi 0, %s127
      %s128 = sphi 0, %s125
      %s129 = sphi 0, %s128
      %s145 = sphi 0, %s129
    $region4: #{tpu_custom_call.1} parent=1 // loop_header_branch
      %15 = sbr.rel (%p13) target = $region8
    $region5: #{tpu_custom_call.1} parent=1 // loop_body
      %s17 = ssub.s32 %s12, 1
      %s18 = ssub.s32 %s12, 2
      %s28 = sadd.s32 1, %s21
      %p29 = scmp.ge.s32.totalorder %s28, 1
      %s30 = scalar_select %p29, 0, %s28
      %s31 = sadd.s32 1, %s20
      %s32 = scalar_select %p29, %s31, %s20
      %p33 = scmp.ge.s32.totalorder %s32, 1
      %s34 = scalar_select %p33, 0, %s32
      %s35 = sadd.s32 1, %s19
      %s36 = scalar_select %p33, %s35, %s19
      %p37 = scmp.ge.s32.totalorder %s36, 2
      %s38 = scalar_select %p37, 0, %s36
      %s39 = ssub.s32 %s19, %s38
      %s40 = ssub.s32 %s21, %s30
      %s41 = sor.u32 %s39, %s40
      %p42 = scmp.eq.s32.totalorder %s41, 0
      %s44 = sadd.s32 %s43, 1
      %s45 = scalar_select %p42, %s43, %s44
      %p48 = pneg %p42
      %p49 = scmp.eq.s32.totalorder %s12, 1
      %p50 = por %p48, %p49
      %p51 = scmp.ne.s32.totalorder %s43, %s46
      %p52 = scmp.eq.s32.totalorder %s12, 0
      %p53 = por %p51, %p52
      %p54 = scmp.ne.s32.totalorder %s43, %s46
      %p55 = scmp.eq.s32.totalorder %s17, 1
      %p56 = por %p54, %p55
      %p57 = scmp.ne.s32.totalorder %s46, %s47
      %p58 = scmp.eq.s32.totalorder %s17, 0
      %p59 = por %p57, %p58
      %p60 = scmp.ne.s32.totalorder %s46, %s47
      %p61 = scmp.eq.s32.totalorder %s18, 1
      %p62 = por %p60, %p61
      %p64 = scmp.ne.s32.totalorder %s47, %s63
      %p65 = scmp.eq.s32.totalorder %s18, 0
      %p66 = por %p64, %p65
      %s67 = ssub.s32 %s21, %s30
      %s68 = ssub.s32 %s20, %s34
      %s69 = sor.u32 %s67, %s68
      %p70 = scmp.eq.s32.totalorder %s69, 0
      %s72 = sadd.s32 %s71, 1
      %s73 = scalar_select %p70, %s71, %s72
      %p76 = pneg %p70
      %p77 = scmp.eq.s32.totalorder %s12, 1
      %p78 = por %p76, %p77
      %p79 = scmp.ne.s32.totalorder %s71, %s74
      %p80 = scmp.eq.s32.totalorder %s12, 0
      %p81 = por %p79, %p80
      %p82 = scmp.ne.s32.totalorder %s71, %s74
      %p83 = scmp.eq.s32.totalorder %s17, 1
      %p84 = por %p82, %p83
      %p85 = scmp.ne.s32.totalorder %s74, %s75
      %p86 = scmp.eq.s32.totalorder %s17, 0
      %p87 = por %p85, %p86
      %p88 = scmp.ne.s32.totalorder %s74, %s75
      %p89 = scmp.eq.s32.totalorder %s18, 1
      %p90 = por %p88, %p89
      %p92 = scmp.ne.s32.totalorder %s75, %s91
      %p93 = scmp.eq.s32.totalorder %s18, 0
      %p94 = por %p92, %p93
      %s95 = ssub.s32 %s20, %s34
      %p96 = scmp.eq.s32.totalorder %s95, 0
      %s98 = sadd.s32 %s97, 1
      %s99 = scalar_select %p96, %s97, %s98
      %p102 = pneg %p96
      %p103 = scmp.eq.s32.totalorder %s12, 1
      %p104 = por %p102, %p103
      %p105 = scmp.ne.s32.totalorder %s97, %s100
      %p106 = scmp.eq.s32.totalorder %s12, 0
      %p107 = por %p105, %p106
      %p108 = scmp.ne.s32.totalorder %s97, %s100
      %p109 = scmp.eq.s32.totalorder %s17, 1
      %p110 = por %p108, %p109
      %p111 = scmp.ne.s32.totalorder %s100, %s101
      %p112 = scmp.eq.s32.totalorder %s17, 0
      %p113 = por %p111, %p112
      %p114 = scmp.ne.s32.totalorder %s100, %s101
      %p115 = scmp.eq.s32.totalorder %s18, 1
      %p116 = por %p114, %p115
      %p118 = scmp.ne.s32.totalorder %s101, %s117
      %p119 = scmp.eq.s32.totalorder %s18, 0
      %p120 = por %p118, %p119
      %s121 = ssub.s32 %s19, %s38
      %s122 = ssub.s32 %s20, %s34
      %s123 = sor.u32 %s121, %s122
      %p124 = scmp.eq.s32.totalorder %s123, 0
      %s126 = sadd.s32 %s125, 1
      %s127 = scalar_select %p124, %s125, %s126
      %p130 = pneg %p124
      %p131 = scmp.eq.s32.totalorder %s12, 1
      %p132 = por %p130, %p131
      %p133 = scmp.ne.s32.totalorder %s125, %s128
      %p134 = scmp.eq.s32.totalorder %s12, 0
      %p135 = por %p133, %p134
      %p136 = scmp.ne.s32.totalorder %s125, %s128
      %p137 = scmp.eq.s32.totalorder %s17, 1
      %p138 = por %p136, %p137
      %p139 = scmp.ne.s32.totalorder %s128, %s129
      %p140 = scmp.eq.s32.totalorder %s17, 0
      %p141 = por %p139, %p140
      %p142 = scmp.ne.s32.totalorder %s128, %s129
      %p143 = scmp.eq.s32.totalorder %s18, 1
      %p144 = por %p142, %p143
      %p146 = scmp.ne.s32.totalorder %s129, %s145
      %p147 = scmp.eq.s32.totalorder %s18, 0
      %p148 = por %p146, %p147
      %p149 = scmp.le.s32.totalorder 1, %s12
      %p150 = scmp.lt.s32.totalorder %s12, 3
      %p151 = pnand %p149, %p150
      %p152 = pneg %p151
      // Predicated region
      $region9: #{tpu_custom_call.1} parent=5 // pred_check
        _
      $region10: #{tpu_custom_call.1} parent=5 // pred_check_branch
        %154 = sbr.rel (%p151) target = $region12
      $region11: #{tpu_custom_call.1} parent=5 // pred_region
        %s155 = ssub.s32 %s12, 1
        // Predicated region
        $region13: #{tpu_custom_call.1} parent=11 // pred_check
          %p156 = pneg %p87
        $region14: #{tpu_custom_call.1} parent=11 // pred_check_branch
          %158 = sbr.rel (%p156) target = $region16
        $region15: #{tpu_custom_call.1} parent=11 // pred_region
          %s159 = smul.u32 4, %s24
          %p160 = scmp.lt.s32.totalorder %s159, 3
          %s161 = scalar_select %p160, %s159, 3
          %p162 = scmp.lt.s32.totalorder %s23, 0
          %s163 = scalar_select %p162, %s23, 0
          %s164 = sadd.s32 %s163, %s161
          %s165 = smul.addr %s164, 8
          %s166 = scalar_lea.vmem %s1, %s165
          %s167 = smul.u32 4, %s24
        $region16: #{tpu_custom_call.1} parent=11 // pred_fallthru
          _
        // Predicated region
        $region17: #{tpu_custom_call.1} parent=11 // pred_check
          %p168 = pneg %p113
        $region18: #{tpu_custom_call.1} parent=11 // pred_check_branch
          %170 = sbr.rel (%p168) target = $region20
        $region19: #{tpu_custom_call.1} parent=11 // pred_region
          %p171 = scmp.lt.s32.totalorder %s23, 0
          %s172 = scalar_select %p171, %s23, 0
          %s173 = scalar_lea.vmem %s2, %s172
        $region20: #{tpu_custom_call.1} parent=11 // pred_fallthru
          _
      $region12: #{tpu_custom_call.1} parent=5 // pred_fallthru
        _
      %p174 = scmp.lt.s32.totalorder %s12, 2
      // Predicated region
      $region21: #{tpu_custom_call.1} parent=5 // pred_check
        %p175 = pneg %p174
      $region22: #{tpu_custom_call.1} parent=5 // pred_check_branch
        %177 = sbr.rel (%p175) target = $region24
      $region23: #{tpu_custom_call.1} parent=5 // pred_region
        // Predicated region
        $region25: #{tpu_custom_call.1} parent=23 // pred_check
          %p178 = pneg %p53
        $region26: #{tpu_custom_call.1} parent=23 // pred_check_branch
          %180 = sbr.rel (%p178) target = $region28
        $region27: #{tpu_custom_call.1} parent=23 // pred_region
          %p181 = scmp.lt.s32.totalorder %s19, 1
          %s182 = scalar_select %p181, %s19, 1
          %p183 = scmp.lt.s32.totalorder %s21, 0
          %s184 = scalar_select %p183, %s21, 0
          %s185 = sadd.s32 %s184, %s182
          %s186 = smul.addr %s185, 8
          %s187 = scalar_lea.vmem %s0, %s186
        $region28: #{tpu_custom_call.1} parent=23 // pred_fallthru
          _
      $region24: #{tpu_custom_call.1} parent=5 // pred_fallthru
        _
      %p188 = scmp.le.s32.totalorder 1, %s12
      %p189 = scmp.lt.s32.totalorder %s12, 3
      %p190 = pnand %p188, %p189
      %p191 = pneg %p190
      // Predicated region
      $region29: #{tpu_custom_call.1} parent=5 // pred_check
        _
      $region30: #{tpu_custom_call.1} parent=5 // pred_check_branch
        %193 = sbr.rel (%p190) target = $region32
      $region31: #{tpu_custom_call.1} parent=5 // pred_region
        %s194 = ssub.s32 %s12, 1
        %p195 = scmp.lt.s32.totalorder %s22, 1
        %s196 = scalar_select %p195, %s22, 1
        %p197 = scmp.lt.s32.totalorder %s24, 0
        %s198 = scalar_select %p197, %s24, 0
        %s199 = sadd.s32 %s198, %s196
        %s200 = smul.addr %s199, 8
        %s201 = scalar_lea.vmem %s0, %s200
        %p202 = pneg %p59
        %p203 = pneg %p56
        %s204 = smul.u32 4, %s24
        %p205 = scmp.lt.s32.totalorder %s204, 3
        %s206 = scalar_select %p205, %s204, 3
        %p207 = scmp.lt.s32.totalorder %s23, 0
        %s208 = scalar_select %p207, %s23, 0
        %s209 = sadd.s32 %s208, %s206
        %s210 = smul.addr %s209, 8
        %s211 = scalar_lea.vmem %s1, %s210
        %p212 = pneg %p87
        %p213 = pneg %p84
        %p214 = scmp.lt.s32.totalorder %s23, 0
        %s215 = scalar_select %p214, %s23, 0
        %s216 = scalar_lea.vmem %s2, %s215
        %p217 = pneg %p113
        %p218 = pneg %p110
        %p219 = pneg %p141
        %p220 = pneg %p138
        %s221 = sand.u32 %s128, 1
        %s222 = scalar_lea.sflag [#allocation3], %s221
        %s223 = sand.u32 %s128, 1
        %s224 = smul.addr %s223, 8
        %s225 = scalar_lea.vmem [#allocation2], %s224
        %p226 = scmp.lt.s32.totalorder %s22, 1
        %s227 = scalar_select %p226, %s22, 1
        %p228 = scmp.lt.s32.totalorder %s24, 0
        %s229 = scalar_select %p228, %s24, 0
        %s230 = sadd.s32 %s229, %s227
        %s231 = smul.addr %s230, 8
        %s232 = scalar_lea.vmem %s0, %s231
        %s233 = smul.u32 4, %s24
        %p234 = scmp.lt.s32.totalorder %s233, 3
        %s235 = scalar_select %p234, %s233, 3
        %p236 = scmp.lt.s32.totalorder %s23, 0
        %s237 = scalar_select %p236, %s23, 0
        %s238 = sadd.s32 %s237, %s235
        %s239 = smul.addr %s238, 8
        %s240 = scalar_lea.vmem %s1, %s239
        %s241 = smul.u32 4, %s24
        %p242 = scmp.lt.s32.totalorder %s23, 0
        %s243 = scalar_select %p242, %s23, 0
        %s244 = scalar_lea.vmem %s2, %s243
        %p245 = scmp.eq.s32.totalorder %s24, 0
        // Predicated region
        $region33: #{tpu_custom_call.1} parent=31 // pred_check
          %p246 = pneg %p245
        $region34: #{tpu_custom_call.1} parent=31 // pred_check_branch
          %248 = sbr.rel (%p246) target = $region36
        $region35: #{tpu_custom_call.1} parent=31 // pred_region
          %v249 = vld [vmem:[%s244] sm:$0x1]
          %v251 = vlaneseq
          %v252 = vshrl.u32 %v251, 7
          %v253 = vsub.s32 0, %v252
          %v254 = vrot.slane %v249, %v253
          %vm256 = vcmask 130048
          %257 = vst.msk [vmem:[%s225] sm:$0xff] %vm256, %v254
        $region36: #{tpu_custom_call.1} parent=31 // pred_fallthru
          _
        %v258 = vld [vmem:[%s225] sm:$0xff]
        %v259 = vld [vmem:[%s232] sm:$0xff]
        %v260 = vld [vmem:[%s240] sm:$0xff]
        %v261 = vld [vmem:[%s240 + $0x8] sm:$0xff]
        %v262 = vld [vmem:[%s240 + $0x10] sm:$0xff]
        %v263 = vld [vmem:[%s240 + $0x18] sm:$0xff]
        %vm264 = vcmask 261120
        %v266 = vsel %vm264, %v259, 0
        %268 = vmatprep.subr.mxu0 0.0
        %269 = vmatpush1.msra.mxu0 %v260
        %270 = vmatprep.subr.mxu0 0.0
        %271 = vmatpush1.msra.mxu0 %v261
        %272 = vmatprep.subr.mxu0 0.0
        %273 = vmatpush1.msra.mxu0 %v262
        %274 = vmatprep.subr.mxu0 0.0
        %275 = vmatpush1.msra.mxu0 %v263
        %276 = vmatprep.subr.mxu0 0.0
        %277 = vmatpush1.msra.mxu0 0.0
        %278 = vmatprep.subr.mxu0 0.0
        %279 = vmatpush1.msra.mxu0 0.0
        %280 = vmatprep.subr.mxu0 0.0
        %281 = vmatpush1.msra.mxu0 0.0
        %282 = vmatprep.subr.mxu0 0.0
        %283 = vmatpush1.msra.mxu0 0.0
        %284 = vmatprep.subr.mxu0 0.0
        %285 = vmatpush1.msra.mxu0 0.0
        %286 = vmatprep.subr.mxu0 0.0
        %287 = vmatpush1.msra.mxu0 0.0
        %288 = vmatprep.subr.mxu0 0.0
        %289 = vmatpush1.msra.mxu0 0.0
        %290 = vmatprep.subr.mxu0 0.0
        %291 = vmatpush1.msra.mxu0 0.0
        %292 = vmatprep.subr.mxu0 0.0
        %293 = vmatpush1.msra.mxu0 0.0
        %294 = vmatprep.subr.mxu0 0.0
        %295 = vmatpush1.msra.mxu0 0.0
        %296 = vmatprep.subr.mxu0 0.0
        %297 = vmatpush1.msra.mxu0 0.0
        %298 = vmatprep.subr.mxu0 0.0
        %299 = vmatpush1.msra.mxu0 0.0
        %300 = vmatprep.subr.mxu0 0.0
        %301 = vmatpush1.msra.mxu0 0.0
        %302 = vmatprep.subr.mxu0 0.0
        %303 = vmatpush1.msra.mxu0 0.0
        %304 = vmatprep.subr.mxu0 0.0
        %305 = vmatpush1.msra.mxu0 0.0
        %306 = vmatprep.subr.mxu0 0.0
        %307 = vmatpush1.msra.mxu0 0.0
        %308 = vmatprep.subr.mxu0 0.0
        %309 = vmatpush1.msra.mxu0 0.0
        %310 = vmatprep.subr.mxu0 0.0
        %311 = vmatpush1.msra.mxu0 0.0
        %312 = vmatprep.subr.mxu0 0.0
        %313 = vmatpush1.msra.mxu0 0.0
        %314 = vmatprep.subr.mxu0 0.0
        %315 = vmatpush1.msra.mxu0 0.0
        %316 = vmatprep.subr.mxu0 0.0
        %317 = vmatpush1.msra.mxu0 0.0
        %318 = vmatprep.subr.mxu0 0.0
        %319 = vmatpush1.msra.mxu0 0.0
        %320 = vmatprep.subr.mxu0 0.0
        %321 = vmatpush1.msra.mxu0 0.0
        %322 = vmatprep.subr.mxu0 0.0
        %323 = vmatpush1.msra.mxu0 0.0
        %324 = vmatprep.subr.mxu0 0.0
        %325 = vmatpush1.msra.mxu0 0.0
        %326 = vmatprep.subr.mxu0 0.0
        %327 = vmatpush1.msra.mxu0 0.0
        %328 = vmatprep.subr.mxu0 0.0
        %329 = vmatpush1.msra.mxu0 0.0
        %330 = vmatprep.subr.mxu0 0.0
        %331 = vmatpush1.msra.mxu0 0.0
        %332 = vmatprep.mubr.f32.mxu0 0.0
        %333 = vmatmul.mubr.f32.gmra.mrb[0].mxu0 %v266
        %v334 = vpop.f32.mrb[0].mxu0
        %v335 = vadd.f32 0.0, %v334
        %v336 = vpop.f32.mrb[0].mxu0
        %337 = vdwg.mxu0
        %v338 = vadd.f32 %v258, %v335
        %vm339 = vcmask 130048
        %340 = vst.msk [vmem:[%s225] sm:$0xff] %vm339, %v338
        %s341 = sand.u32 %s128, 1
        %s342 = scalar_lea.sflag [#allocation3], %s341
        %s343 = sand.u32 %s128, 1
        %s344 = smul.addr %s343, 8
        %s345 = scalar_lea.vmem [#allocation2], %s344
        // Predicated region
        $region37: #{tpu_custom_call.1} parent=31 // pred_check
          %p346 = pneg %p138
        $region38: #{tpu_custom_call.1} parent=31 // pred_check_branch
          %348 = sbr.rel (%p346) target = $region40
        $region39: #{tpu_custom_call.1} parent=31 // pred_region
          %s350 = ssub.s32 128, 128
          %351 = vsyncadd %s342, %s350
          %s352 = sadd.s32 %s23, %s22
          %s353 = smul.addr %s352, 128
          %s354 = scalar_lea.hbm %s3, %s353
          %s356 = sshll.u32 %s345, 4
          %s357 = int_to_ptr.vmem [resolvable:$true] %s356
          %359 = dma.vmem_to_hbm [thread:$0]  %s357, 128, %s354, %s342
        $region40: #{tpu_custom_call.1} parent=31 // pred_fallthru
          _
      $region32: #{tpu_custom_call.1} parent=5 // pred_fallthru
        _
      %p360 = scmp.le.s32.totalorder 2, %s12
      // Predicated region
      $region41: #{tpu_custom_call.1} parent=5 // pred_check
        %p361 = pneg %p360
      $region42: #{tpu_custom_call.1} parent=5 // pred_check_branch
        %363 = sbr.rel (%p361) target = $region44
      $region43: #{tpu_custom_call.1} parent=5 // pred_region
        %s364 = ssub.s32 %s12, 2
        // Predicated region
        $region45: #{tpu_custom_call.1} parent=43 // pred_check
          %p365 = pneg %p144
        $region46: #{tpu_custom_call.1} parent=43 // pred_check_branch
          %367 = sbr.rel (%p365) target = $region48
        $region47: #{tpu_custom_call.1} parent=43 // pred_region
          %s368 = sand.u32 %s129, 1
          %s369 = scalar_lea.sflag [#allocation3], %s368
          %s370 = sand.u32 %s129, 1
          %s371 = smul.addr %s370, 8
          %s372 = scalar_lea.vmem [#allocation2], %s371
          %373 = dma.done %s369, 128
        $region48: #{tpu_custom_call.1} parent=43 // pred_fallthru
          _
      $region44: #{tpu_custom_call.1} parent=5 // pred_fallthru
        _
    $region6: #{tpu_custom_call.1} parent=1 // loop_footer
      %s16 = sadd.s32 1, %s12
    $region7: #{tpu_custom_call.1} parent=1 // loop_footer_branch
      %11 = sbr.rel target = $region3
    $region8: #{tpu_custom_call.1} parent=1 // loop_exit
      _
    %374 = vsyncpa [#allocation3], 1
    %s375 = scalar_lea.sflag [#allocation3], 1
    %376 = vsyncpa %s375, 1

</llo_original>
